<compile_context>
chip_gen: v5e
topology: v5e:2x2
jax: 0.10.0
libtpu: 0.0.40
codegen_flags: <defaults>
</compile_context>

<pallas_src>
import functools

import jax
import jax.numpy as jnp
from jax.experimental import pallas as pl
from jax.experimental.pallas import tpu as pltpu


def _se_weight_kernel(x_ref, w1_ref, b1_ref, w2_ref, b2_ref, o_ref, *, inv_hw):
    """One grid step = one image of the batch.

    x_ref:  (1, C, HW)  image with spatial dims flattened onto the lane axis (VMEM)
    w1_ref: (Cr, C)     fc1 weight (PyTorch (Cr, C, 1, 1) squeezed)
    b1_ref: (Cr, 1)     fc1 bias
    w2_ref: (C, Cr)     fc2 weight (PyTorch (C, Cr, 1, 1) squeezed)
    b2_ref: (C, 1)      fc2 bias
    o_ref:  (1, C, 1)   per-channel SE attention weight
    """
    xv = x_ref[0]  # (C, HW)

    # AdaptiveAvgPool2d(1): cross-lane reduce over the flattened spatial axis.
    pooled = jnp.sum(xv, axis=-1, keepdims=True) * inv_hw            # (C, 1)

    # fc1 (1x1 conv, with bias) + ReLU.
    h = jnp.dot(w1_ref[...], pooled,
                preferred_element_type=jnp.float32) + b1_ref[...]    # (Cr, 1)
    h = jnp.maximum(h, 0.0)

    # fc2 (1x1 conv, with bias) + Sigmoid.
    y = jnp.dot(w2_ref[...], h,
                preferred_element_type=jnp.float32) + b2_ref[...]    # (C, 1)
    o_ref[0] = (1.0 / (1.0 + jnp.exp(-y))).astype(o_ref.dtype)


def se_weight(x_nchw, fc1_w, fc1_b, fc2_w, fc2_b):
    """SEWeightModule.forward.

    x_nchw: (N, C, H, W) float32
    fc1_w:  (C//r, C, 1, 1), fc1_b: (C//r,)
    fc2_w:  (C, C//r, 1, 1), fc2_b: (C,)
    Returns (N, C, 1, 1).
    """
    N, C, H, W = x_nchw.shape
    Cr = fc1_w.shape[0]
    HW = H * W

    # Layout glue (no transposes, only contiguous reshapes).
    x = x_nchw.reshape(N, C, HW)
    w1 = fc1_w.reshape(Cr, C).astype(jnp.float32)
    b1 = fc1_b.reshape(Cr, 1).astype(jnp.float32)
    w2 = fc2_w.reshape(C, Cr).astype(jnp.float32)
    b2 = fc2_b.reshape(C, 1).astype(jnp.float32)

    kernel = functools.partial(_se_weight_kernel, inv_hw=1.0 / HW)

    out = pl.pallas_call(
        kernel,
        out_shape=jax.ShapeDtypeStruct((N, C, 1), x_nchw.dtype),
        grid_spec=pltpu.PrefetchScalarGridSpec(
            num_scalar_prefetch=0,
            grid=(N,),
            in_specs=[
                pl.BlockSpec((1, C, HW), lambda n: (n, 0, 0)),
                pl.BlockSpec((Cr, C), lambda n: (0, 0)),
                pl.BlockSpec((Cr, 1), lambda n: (0, 0)),
                pl.BlockSpec((C, Cr), lambda n: (0, 0)),
                pl.BlockSpec((C, 1), lambda n: (0, 0)),
            ],
            out_specs=pl.BlockSpec((1, C, 1), lambda n: (n, 0, 0)),
        ),
        compiler_params=pltpu.CompilerParams(
            dimension_semantics=("parallel",)),
    )(x, w1, b1, w2, b2)

    return out.reshape(N, C, 1, 1)


def _reference(x_nchw, fc1_w, fc1_b, fc2_w, fc2_b):
    Cr = fc1_w.shape[0]
    C = fc2_w.shape[0]
    pooled = jnp.mean(x_nchw, axis=(2, 3))                          # (N, C)
    h = jnp.maximum(pooled @ fc1_w.reshape(Cr, C).T + fc1_b, 0.0)   # (N, Cr)
    y = h @ fc2_w.reshape(C, Cr).T + fc2_b                          # (N, C)
    return jax.nn.sigmoid(y)[:, :, None, None]


if __name__ == "__main__":
    key = jax.random.PRNGKey(0)
    k_x, k_w1, k_b1, k_w2, k_b2 = jax.random.split(key, 5)

    # SEWeightModule(channels=64, reduction=16)  ->  hidden = 4.
    N, C, H, W = 2, 64, 16, 16
    reduction = 16
    Cr = C // reduction

    x = jax.random.normal(k_x, (N, C, H, W), jnp.float32)
    fc1_w = jax.random.normal(k_w1, (Cr, C, 1, 1), jnp.float32) * 0.1
    fc1_b = jax.random.normal(k_b1, (Cr,), jnp.float32) * 0.1
    fc2_w = jax.random.normal(k_w2, (C, Cr, 1, 1), jnp.float32) * 0.1
    fc2_b = jax.random.normal(k_b2, (C,), jnp.float32) * 0.1

    out = se_weight(x, fc1_w, fc1_b, fc2_w, fc2_b)
    out = jax.block_until_ready(out)

    ref = _reference(x, fc1_w, fc1_b, fc2_w, fc2_b)
    assert out.shape == ref.shape == (N, C, 1, 1)
    assert jnp.max(jnp.abs(out - ref)) < 1e-5

    print("KERNEL_OK")
</pallas_src>

<mosaic_0001>
module attributes {stable_mosaic.version = 11 : i64} {
  func.func @_se_weight_kernel(%arg0: i32, %arg1: memref<1x64x256xf32, #tpu.memory_space<vmem>>, %arg2: memref<4x64xf32, #tpu.memory_space<vmem>>, %arg3: memref<4x1xf32, #tpu.memory_space<vmem>>, %arg4: memref<64x4xf32, #tpu.memory_space<vmem>>, %arg5: memref<64x1xf32, #tpu.memory_space<vmem>>, %arg6: memref<1x64x1xf32, #tpu.memory_space<vmem>>) attributes {dimension_semantics = [#tpu.dimension_semantics<parallel>], iteration_bounds = array<i64: 2>, scalar_prefetch = 0 : i64, scratch_operands = 0 : i64, tpu.core_type = #tpu.core_type<tc>, window_params = [{transform_indices = @transform_0, window_bounds = array<i64: 1, 64, 256>}, {pipeline_mode = #tpu.pipeline_mode<synchronous>, transform_indices = @transform_1, window_bounds = array<i64: 4, 64>}, {pipeline_mode = #tpu.pipeline_mode<synchronous>, transform_indices = @transform_2, window_bounds = array<i64: 4, 1>}, {pipeline_mode = #tpu.pipeline_mode<synchronous>, transform_indices = @transform_3, window_bounds = array<i64: 64, 4>}, {pipeline_mode = #tpu.pipeline_mode<synchronous>, transform_indices = @transform_4, window_bounds = array<i64: 64, 1>}, {transform_indices = @transform_5, window_bounds = array<i64: 1, 64, 1>}]} {
    %c0 = arith.constant 0 : index
    %c0_0 = arith.constant 0 : index
    %c0_1 = arith.constant 0 : index
    %0 = vector.load %arg1[%c0, %c0_0, %c0_1] : memref<1x64x256xf32, #tpu.memory_space<vmem>>, vector<1x64x256xf32>
    %1 = vector.shape_cast %0 : vector<1x64x256xf32> to vector<64x256xf32>
    %cst = arith.constant dense<0.000000e+00> : vector<64xf32>
    %2 = vector.multi_reduction <add>, %1, %cst [1] : vector<64x256xf32> to vector<64xf32>
    %3 = vector.shape_cast %2 : vector<64xf32> to vector<64x1xf32>
    %cst_2 = arith.constant 3.906250e-03 : f32
    %4 = vector.broadcast %cst_2 : f32 to vector<64x1xf32>
    %5 = arith.mulf %3, %4 : vector<64x1xf32>
    %c0_3 = arith.constant 0 : index
    %c0_4 = arith.constant 0 : index
    %6 = vector.load %arg2[%c0_3, %c0_4] : memref<4x64xf32, #tpu.memory_space<vmem>>, vector<4x64xf32>
    %cst_5 = arith.constant dense<0.000000e+00> : vector<4x1xf32>
    %7 = tpu.matmul %6, %5, %cst_5 {dimension_numbers = #tpu.dot_dimension_numbers<[1], [0], [0], [1], [0, 0, 1, 1], [], []>} : vector<4x64xf32>, vector<64x1xf32>, vector<4x1xf32> -> vector<4x1xf32>
    %c0_6 = arith.constant 0 : index
    %c0_7 = arith.constant 0 : index
    %8 = vector.load %arg3[%c0_6, %c0_7] : memref<4x1xf32, #tpu.memory_space<vmem>>, vector<4x1xf32>
    %9 = arith.addf %7, %8 : vector<4x1xf32>
    %cst_8 = arith.constant 0.000000e+00 : f32
    %10 = vector.broadcast %cst_8 : f32 to vector<4x1xf32>
    %11 = arith.maximumf %9, %10 : vector<4x1xf32>
    %c0_9 = arith.constant 0 : index
    %c0_10 = arith.constant 0 : index
    %12 = vector.load %arg4[%c0_9, %c0_10] : memref<64x4xf32, #tpu.memory_space<vmem>>, vector<64x4xf32>
    %cst_11 = arith.constant dense<0.000000e+00> : vector<64x1xf32>
    %13 = tpu.matmul %12, %11, %cst_11 {dimension_numbers = #tpu.dot_dimension_numbers<[1], [0], [0], [1], [0, 0, 1, 1], [], []>} : vector<64x4xf32>, vector<4x1xf32>, vector<64x1xf32> -> vector<64x1xf32>
    %c0_12 = arith.constant 0 : index
    %c0_13 = arith.constant 0 : index
    %14 = vector.load %arg5[%c0_12, %c0_13] : memref<64x1xf32, #tpu.memory_space<vmem>>, vector<64x1xf32>
    %15 = arith.addf %13, %14 : vector<64x1xf32>
    %cst_14 = arith.constant 0.000000e+00 : f32
    %16 = vector.broadcast %cst_14 : f32 to vector<64x1xf32>
    %17 = arith.subf %16, %15 : vector<64x1xf32>
    %18 = math.exp %17 : vector<64x1xf32>
    %cst_15 = arith.constant 1.000000e+00 : f32
    %19 = vector.broadcast %cst_15 : f32 to vector<64x1xf32>
    %20 = arith.addf %19, %18 : vector<64x1xf32>
    %cst_16 = arith.constant 1.000000e+00 : f32
    %21 = vector.broadcast %cst_16 : f32 to vector<64x1xf32>
    %22 = arith.divf %21, %20 : vector<64x1xf32>
    %c0_17 = arith.constant 0 : index
    %c0_18 = arith.constant 0 : index
    %c0_19 = arith.constant 0 : index
    %23 = vector.load %arg6[%c0_17, %c0_18, %c0_19] : memref<1x64x1xf32, #tpu.memory_space<vmem>>, vector<1x64x1xf32>
    %24 = vector.shape_cast %23 : vector<1x64x1xf32> to vector<64x1xf32>
    %25 = vector.shape_cast %22 : vector<64x1xf32> to vector<1x64x1xf32>
    tpu.vector_store %arg6[%c0_17, %c0_18, %c0_19], %25 {strides = array<i32>} : memref<1x64x1xf32, #tpu.memory_space<vmem>>, vector<1x64x1xf32>,
    return
  }
  func.func @transform_0(%arg0: i32) -> (i32, i32, i32) {
    %c0_i32 = arith.constant 0 : i32
    %c0_i32_0 = arith.constant 0 : i32
    %c0_i32_1 = arith.constant 0 : i32
    return %arg0, %c0_i32, %c0_i32_0 : i32, i32, i32
  }
  func.func @transform_1(%arg0: i32) -> (i32, i32) {
    %c0_i32 = arith.constant 0 : i32
    %c0_i32_0 = arith.constant 0 : i32
    %c0_i32_1 = arith.constant 0 : i32
    return %c0_i32, %c0_i32_0 : i32, i32
  }
  func.func @transform_2(%arg0: i32) -> (i32, i32) {
    %c0_i32 = arith.constant 0 : i32
    %c0_i32_0 = arith.constant 0 : i32
    %c0_i32_1 = arith.constant 0 : i32
    return %c0_i32, %c0_i32_0 : i32, i32
  }
  func.func @transform_3(%arg0: i32) -> (i32, i32) {
    %c0_i32 = arith.constant 0 : i32
    %c0_i32_0 = arith.constant 0 : i32
    %c0_i32_1 = arith.constant 0 : i32
    return %c0_i32, %c0_i32_0 : i32, i32
  }
  func.func @transform_4(%arg0: i32) -> (i32, i32) {
    %c0_i32 = arith.constant 0 : i32
    %c0_i32_0 = arith.constant 0 : i32
    %c0_i32_1 = arith.constant 0 : i32
    return %c0_i32, %c0_i32_0 : i32, i32
  }
  func.func @transform_5(%arg0: i32) -> (i32, i32, i32) {
    %c0_i32 = arith.constant 0 : i32
    %c0_i32_0 = arith.constant 0 : i32
    %c0_i32_1 = arith.constant 0 : i32
    return %arg0, %c0_i32, %c0_i32_0 : i32, i32, i32
  }
}

</mosaic_0001>

<llo_original>
// kernel: tpu_custom_call.1
$region0: #{tpu_custom_call.1}
  #allocation0 [shape = 'u32[]', space=smem, size = 0x4, offset = 0x4, fixed_abs, tag = 'smem constant byte address 0x4 - core index']
  #allocation1 [shape = 'u32[72,128]{1,0:T(1,128)}', space=vmem, size = 0x9000, scoped, tag = 'internal scratch']
  %s0 = inlined_call_operand.hbm [shape: f32[2,64,256], index: 0, kind: input, shape index: {}]
  %s1 = inlined_call_operand.vmem [shape: f32[4,64], index: 1, kind: input, shape index: {}]
  %s2 = inlined_call_operand.vmem [shape: f32[4,1], index: 2, kind: input, shape index: {}]
  %s3 = inlined_call_operand.vmem [shape: f32[64,4], index: 3, kind: input, shape index: {}]
  %s4 = inlined_call_operand.vmem [shape: f32[64,1], index: 4, kind: input, shape index: {}]
  %s5 = inlined_call_operand.vmem [shape: f32[2,64,1], index: 5, kind: output, shape index: {}]
  %s6 = sld [smem:[#allocation0]]
  $region57: #{tpu_custom_call.1} parent=0
    _
  %s8 = ssub.s32 1, %s6
  %s9 = scalar_select 0, %s8, %s6
  $region1: #{tpu_custom_call.1} parent=0
    #allocation2 [shape = 'u8[131072]{0}', space=vmem, size = 0x20000, scoped, tag = 'input window, operand 0']
    #allocation3 [shape = 's32[2]{0}', space=sflag, size = 0x8, scoped, tag = 'scoped memory for tpu_custom_call.1']
    %10 = vsyncpa [#allocation3], 0
    %s11 = scalar_lea.sflag [#allocation3], 1
    %12 = vsyncpa %s11, 0
    loop: start=0, step=1, limit=4
    $region2: #{tpu_custom_call.1} parent=1 // loop_pre_header
      _
    $region3: #{tpu_custom_call.1} parent=1 // loop_header
      %s14 = sphi 0, %s18
      %p15 = scmp.ge.s32.totalorder %s14, 4
      %s24 = sphi 0, %s26
      %s27 = sphi 0, %s24
      %s28 = sphi 0, %s27
      %s44 = sphi 0, %s28
      %s48 = sphi 0, %s48
      %s50 = sphi 0, %s48
      %s51 = sphi 0, %s50
      %s65 = sphi 0, %s51
      %s69 = sphi 0, %s69
      %s71 = sphi 0, %s69
      %s72 = sphi 0, %s71
      %s86 = sphi 0, %s72
      %s90 = sphi 0, %s90
      %s92 = sphi 0, %s90
      %s93 = sphi 0, %s92
      %s107 = sphi 0, %s93
      %s111 = sphi 0, %s111
      %s113 = sphi 0, %s111
      %s114 = sphi 0, %s113
      %s128 = sphi 0, %s114
      %s134 = sphi 0, %s136
      %s137 = sphi 0, %s134
      %s138 = sphi 0, %s137
      %s154 = sphi 0, %s138
    $region4: #{tpu_custom_call.1} parent=1 // loop_header_branch
      %17 = sbr.rel (%p15) target = $region8
    $region5: #{tpu_custom_call.1} parent=1 // loop_body
      %s19 = ssub.s32 %s14, 1
      %s20 = ssub.s32 %s14, 2
      %s21 = sadd.s32 %s14, 1
      %s22 = ssub.s32 %s14, %s21
      %p23 = scmp.eq.s32.totalorder %s22, 0
      %s25 = sadd.s32 %s24, 1
      %s26 = scalar_select %p23, %s24, %s25
      %p29 = pneg %p23
      %p30 = scmp.eq.s32.totalorder %s14, 1
      %p31 = por %p29, %p30
      %p32 = scmp.ne.s32.totalorder %s24, %s27
      %p33 = scmp.eq.s32.totalorder %s14, 0
      %p34 = por %p32, %p33
      %p35 = scmp.ne.s32.totalorder %s24, %s27
      %p36 = scmp.eq.s32.totalorder %s19, 1
      %p37 = por %p35, %p36
      %p38 = scmp.ne.s32.totalorder %s27, %s28
      %p39 = scmp.eq.s32.totalorder %s19, 0
      %p40 = por %p38, %p39
      %p41 = scmp.ne.s32.totalorder %s27, %s28
      %p42 = scmp.eq.s32.totalorder %s20, 1
      %p43 = por %p41, %p42
      %p45 = scmp.ne.s32.totalorder %s28, %s44
      %p46 = scmp.eq.s32.totalorder %s20, 0
      %p47 = por %p45, %p46
      %s49 = sadd.s32 %s48, 1
      %p52 = scmp.eq.s32.totalorder %s14, 1
      %p53 = scmp.ne.s32.totalorder %s48, %s50
      %p54 = scmp.eq.s32.totalorder %s14, 0
      %p55 = por %p53, %p54
      %p56 = scmp.ne.s32.totalorder %s48, %s50
      %p57 = scmp.eq.s32.totalorder %s19, 1
      %p58 = por %p56, %p57
      %p59 = scmp.ne.s32.totalorder %s50, %s51
      %p60 = scmp.eq.s32.totalorder %s19, 0
      %p61 = por %p59, %p60
      %p62 = scmp.ne.s32.totalorder %s50, %s51
      %p63 = scmp.eq.s32.totalorder %s20, 1
      %p64 = por %p62, %p63
      %p66 = scmp.ne.s32.totalorder %s51, %s65
      %p67 = scmp.eq.s32.totalorder %s20, 0
      %p68 = por %p66, %p67
      %s70 = sadd.s32 %s69, 1
      %p73 = scmp.eq.s32.totalorder %s14, 1
      %p74 = scmp.ne.s32.totalorder %s69, %s71
      %p75 = scmp.eq.s32.totalorder %s14, 0
      %p76 = por %p74, %p75
      %p77 = scmp.ne.s32.totalorder %s69, %s71
      %p78 = scmp.eq.s32.totalorder %s19, 1
      %p79 = por %p77, %p78
      %p80 = scmp.ne.s32.totalorder %s71, %s72
      %p81 = scmp.eq.s32.totalorder %s19, 0
      %p82 = por %p80, %p81
      %p83 = scmp.ne.s32.totalorder %s71, %s72
      %p84 = scmp.eq.s32.totalorder %s20, 1
      %p85 = por %p83, %p84
      %p87 = scmp.ne.s32.totalorder %s72, %s86
      %p88 = scmp.eq.s32.totalorder %s20, 0
      %p89 = por %p87, %p88
      %s91 = sadd.s32 %s90, 1
      %p94 = scmp.eq.s32.totalorder %s14, 1
      %p95 = scmp.ne.s32.totalorder %s90, %s92
      %p96 = scmp.eq.s32.totalorder %s14, 0
      %p97 = por %p95, %p96
      %p98 = scmp.ne.s32.totalorder %s90, %s92
      %p99 = scmp.eq.s32.totalorder %s19, 1
      %p100 = por %p98, %p99
      %p101 = scmp.ne.s32.totalorder %s92, %s93
      %p102 = scmp.eq.s32.totalorder %s19, 0
      %p103 = por %p101, %p102
      %p104 = scmp.ne.s32.totalorder %s92, %s93
      %p105 = scmp.eq.s32.totalorder %s20, 1
      %p106 = por %p104, %p105
      %p108 = scmp.ne.s32.totalorder %s93, %s107
      %p109 = scmp.eq.s32.totalorder %s20, 0
      %p110 = por %p108, %p109
      %s112 = sadd.s32 %s111, 1
      %p115 = scmp.eq.s32.totalorder %s14, 1
      %p116 = scmp.ne.s32.totalorder %s111, %s113
      %p117 = scmp.eq.s32.totalorder %s14, 0
      %p118 = por %p116, %p117
      %p119 = scmp.ne.s32.totalorder %s111, %s113
      %p120 = scmp.eq.s32.totalorder %s19, 1
      %p121 = por %p119, %p120
      %p122 = scmp.ne.s32.totalorder %s113, %s114
      %p123 = scmp.eq.s32.totalorder %s19, 0
      %p124 = por %p122, %p123
      %p125 = scmp.ne.s32.totalorder %s113, %s114
      %p126 = scmp.eq.s32.totalorder %s20, 1
      %p127 = por %p125, %p126
      %p129 = scmp.ne.s32.totalorder %s114, %s128
      %p130 = scmp.eq.s32.totalorder %s20, 0
      %p131 = por %p129, %p130
      %s132 = ssub.s32 %s14, %s21
      %p133 = scmp.eq.s32.totalorder %s132, 0
      %s135 = sadd.s32 %s134, 1
      %s136 = scalar_select %p133, %s134, %s135
      %p139 = pneg %p133
      %p140 = scmp.eq.s32.totalorder %s14, 1
      %p141 = por %p139, %p140
      %p142 = scmp.ne.s32.totalorder %s134, %s137
      %p143 = scmp.eq.s32.totalorder %s14, 0
      %p144 = por %p142, %p143
      %p145 = scmp.ne.s32.totalorder %s134, %s137
      %p146 = scmp.eq.s32.totalorder %s19, 1
      %p147 = por %p145, %p146
      %p148 = scmp.ne.s32.totalorder %s137, %s138
      %p149 = scmp.eq.s32.totalorder %s19, 0
      %p150 = por %p148, %p149
      %p151 = scmp.ne.s32.totalorder %s137, %s138
      %p152 = scmp.eq.s32.totalorder %s20, 1
      %p153 = por %p151, %p152
      %p155 = scmp.ne.s32.totalorder %s138, %s154
      %p156 = scmp.eq.s32.totalorder %s20, 0
      %p157 = por %p155, %p156
      %p158 = scmp.le.s32.totalorder 1, %s14
      %p159 = scmp.lt.s32.totalorder %s14, 3
      %p160 = pnand %p158, %p159
      %p161 = pneg %p160
      // Predicated region
      $region9: #{tpu_custom_call.1} parent=5 // pred_check
        _
      $region10: #{tpu_custom_call.1} parent=5 // pred_check_branch
        %163 = sbr.rel (%p160) target = $region12
      $region11: #{tpu_custom_call.1} parent=5 // pred_region
        %s164 = ssub.s32 %s14, 1
        // Predicated region
        $region13: #{tpu_custom_call.1} parent=11 // pred_check
          %p165 = pneg %p61
        $region14: #{tpu_custom_call.1} parent=11 // pred_check_branch
          %167 = sbr.rel (%p165) target = $region16
        $region15: #{tpu_custom_call.1} parent=11 // pred_region
          _
        $region16: #{tpu_custom_call.1} parent=11 // pred_fallthru
          _
        // Predicated region
        $region17: #{tpu_custom_call.1} parent=11 // pred_check
          %p168 = pneg %p82
        $region18: #{tpu_custom_call.1} parent=11 // pred_check_branch
          %170 = sbr.rel (%p168) target = $region20
        $region19: #{tpu_custom_call.1} parent=11 // pred_region
          _
        $region20: #{tpu_custom_call.1} parent=11 // pred_fallthru
          _
        // Predicated region
        $region21: #{tpu_custom_call.1} parent=11 // pred_check
          %p171 = pneg %p103
        $region22: #{tpu_custom_call.1} parent=11 // pred_check_branch
          %173 = sbr.rel (%p171) target = $region24
        $region23: #{tpu_custom_call.1} parent=11 // pred_region
          _
        $region24: #{tpu_custom_call.1} parent=11 // pred_fallthru
          _
        // Predicated region
        $region25: #{tpu_custom_call.1} parent=11 // pred_check
          %p174 = pneg %p124
        $region26: #{tpu_custom_call.1} parent=11 // pred_check_branch
          %176 = sbr.rel (%p174) target = $region28
        $region27: #{tpu_custom_call.1} parent=11 // pred_region
          _
        $region28: #{tpu_custom_call.1} parent=11 // pred_fallthru
          _
      $region12: #{tpu_custom_call.1} parent=5 // pred_fallthru
        _
      %p177 = scmp.lt.s32.totalorder %s14, 2
      // Predicated region
      $region29: #{tpu_custom_call.1} parent=5 // pred_check
        %p178 = pneg %p177
      $region30: #{tpu_custom_call.1} parent=5 // pred_check_branch
        %180 = sbr.rel (%p178) target = $region32
      $region31: #{tpu_custom_call.1} parent=5 // pred_region
        // Predicated region
        $region33: #{tpu_custom_call.1} parent=31 // pred_check
          %p181 = pneg %p34
        $region34: #{tpu_custom_call.1} parent=31 // pred_check_branch
          %183 = sbr.rel (%p181) target = $region36
        $region35: #{tpu_custom_call.1} parent=31 // pred_region
          %s184 = sand.u32 %s24, 1
          %s185 = scalar_lea.sflag [#allocation3], %s184
          %s186 = sand.u32 %s24, 1
          %s187 = smul.addr %s186, 128
          %s188 = scalar_lea.vmem [#allocation2], %s187
          %190 = vsyncadd %s185, 0
          %s191 = smul.addr %s14, 16
          %s192 = smul.addr %s191, 8
          %s193 = scalar_lea.hbm %s0, %s192
          %s194 = sshll.u32 %s193, 4
          %s195 = int_to_ptr.hbm [resolvable:$true] %s194
          %s196 = sshll.u32 %s188, 4
          %s197 = int_to_ptr.vmem [resolvable:$true] %s196
          %202 = dma.hbm_to_vmem [thread:$0]  %s195, 2048, %s197, %s185, 256, 256, 16
        $region36: #{tpu_custom_call.1} parent=31 // pred_fallthru
          _
      $region32: #{tpu_custom_call.1} parent=5 // pred_fallthru
        _
      %p203 = scmp.le.s32.totalorder 1, %s14
      %p204 = scmp.lt.s32.totalorder %s14, 3
      %p205 = pnand %p203, %p204
      %p206 = pneg %p205
      // Predicated region
      $region37: #{tpu_custom_call.1} parent=5 // pred_check
        _
      $region38: #{tpu_custom_call.1} parent=5 // pred_check_branch
        %208 = sbr.rel (%p205) target = $region40
      $region39: #{tpu_custom_call.1} parent=5 // pred_region
        %s209 = ssub.s32 %s14, 1
        %s210 = sand.u32 %s27, 1
        %s211 = scalar_lea.sflag [#allocation3], %s210
        %s212 = sand.u32 %s27, 1
        %s213 = smul.addr %s212, 128
        %s214 = scalar_lea.vmem [#allocation2], %s213
        // Predicated region
        $region41: #{tpu_custom_call.1} parent=39 // pred_check
          %p215 = pneg %p40
        $region42: #{tpu_custom_call.1} parent=39 // pred_check_branch
          %217 = sbr.rel (%p215) target = $region44
        $region43: #{tpu_custom_call.1} parent=39 // pred_region
          %219 = dma.done %s211, 2048
        $region44: #{tpu_custom_call.1} parent=39 // pred_fallthru
          _
        %s220 = sand.u32 %s27, 1
        %s221 = scalar_lea.sflag [#allocation3], %s220
        %s222 = sand.u32 %s27, 1
        %s223 = smul.addr %s222, 128
        %s224 = scalar_lea.vmem [#allocation2], %s223
        %p225 = pneg %p40
        %p226 = pneg %p37
        %p227 = pneg %p61
        %p228 = pneg %p58
        %p229 = pneg %p82
        %p230 = pneg %p79
        %p231 = pneg %p103
        %p232 = pneg %p100
        %p233 = pneg %p124
        %p234 = pneg %p121
        %p235 = pneg %p150
        %p236 = pneg %p147
        %p237 = scmp.lt.s32.totalorder %s19, 1
        %s238 = scalar_select %p237, %s19, 1
        %s239 = smul.addr %s238, 8
        %s240 = smul.addr %s239, 8
        %s241 = scalar_lea.vmem %s5, %s240
        %p242 = scmp.lt.s32.totalorder %s19, 1
        %s243 = scalar_select %p242, %s19, 1
        %s244 = smul.addr %s243, 8
        %s245 = smul.addr %s244, 8
        %s246 = scalar_lea.vmem %s5, %s245
        %v247 = vld [vmem:[%s214] sm:$0xff]
        %v248 = vld [vmem:[%s214 + $0x8] sm:$0xff]
        %v249 = vld [vmem:[%s214 + $0x10] sm:$0xff]
        %v250 = vld [vmem:[%s214 + $0x18] sm:$0xff]
        %v251 = vld [vmem:[%s214 + $0x20] sm:$0xff]
        %v252 = vld [vmem:[%s214 + $0x28] sm:$0xff]
        %v253 = vld [vmem:[%s214 + $0x30] sm:$0xff]
        %v254 = vld [vmem:[%s214 + $0x38] sm:$0xff]
        %v255 = vld [vmem:[%s214 + $0x40] sm:$0xff]
        %v256 = vld [vmem:[%s214 + $0x48] sm:$0xff]
        %v257 = vld [vmem:[%s214 + $0x50] sm:$0xff]
        %v258 = vld [vmem:[%s214 + $0x58] sm:$0xff]
        %v259 = vld [vmem:[%s214 + $0x60] sm:$0xff]
        %v260 = vld [vmem:[%s214 + $0x68] sm:$0xff]
        %v261 = vld [vmem:[%s214 + $0x70] sm:$0xff]
        %v262 = vld [vmem:[%s214 + $0x78] sm:$0xff]
        %v263 = vadd.f32 %v247, %v248
        %264 = vadd.xlane.f32.xlu0 %v263
        %v265 = vpop.xlane.xlu0 %264
        %v266 = vadd.f32 %v249, %v250
        %267 = vadd.xlane.f32.xlu0 %v266
        %v268 = vpop.xlane.xlu0 %267
        %v269 = vadd.f32 %v251, %v252
        %270 = vadd.xlane.f32.xlu0 %v269
        %v271 = vpop.xlane.xlu0 %270
        %v272 = vadd.f32 %v253, %v254
        %273 = vadd.xlane.f32.xlu0 %v272
        %v274 = vpop.xlane.xlu0 %273
        %v275 = vadd.f32 %v255, %v256
        %276 = vadd.xlane.f32.xlu0 %v275
        %v277 = vpop.xlane.xlu0 %276
        %v278 = vadd.f32 %v257, %v258
        %279 = vadd.xlane.f32.xlu0 %v278
        %v280 = vpop.xlane.xlu0 %279
        %v281 = vadd.f32 %v259, %v260
        %282 = vadd.xlane.f32.xlu0 %v281
        %v283 = vpop.xlane.xlu0 %282
        %v284 = vadd.f32 %v261, %v262
        %285 = vadd.xlane.f32.xlu0 %v284
        %v286 = vpop.xlane.xlu0 %285
        %v287 = vmul.f32 %v265, 0.00390625
        %v288 = vmul.f32 %v268, 0.00390625
        %v289 = vmul.f32 %v271, 0.00390625
        %v290 = vmul.f32 %v274, 0.00390625
        %v291 = vmul.f32 %v277, 0.00390625
        %v292 = vmul.f32 %v280, 0.00390625
        %v293 = vmul.f32 %v283, 0.00390625
        %v294 = vmul.f32 %v286, 0.00390625
        %v295 = vld [vmem:[%s1] sm:$0xf]
        %v296 = vld [vmem:[%s2] sm:$0xf]
        %vm297 = vcmask 523264
        %v299 = vsel %vm297, %v295, 0
        %301 = vmatpush.msra.mxu0 0.0
        %302 = vmatpush.msra.mxu0 0.0
        %303 = vmatpush.msra.mxu0 0.0
        %304 = vmatpush.msra.mxu0 0.0
        %305 = vmatpush.msra.mxu0 0.0
        %306 = vmatpush.msra.mxu0 0.0
        %307 = vmatpush.msra.mxu0 0.0
        %308 = vmatpush.msra.mxu0 0.0
        %309 = vmatpush.msra.mxu0 %v294
        %310 = vmatpush.msra.mxu0 %v293
        %311 = vmatpush.msra.mxu0 %v292
        %312 = vmatpush.msra.mxu0 %v291
        %313 = vmatpush.msra.mxu0 %v290
        %314 = vmatpush.msra.mxu0 %v289
        %315 = vmatpush.msra.mxu0 %v288
        %316 = vmatpush.msra.mxu0 %v287
        %317 = vmatmul.f32.gmra.mxu0 %v299
        %v318 = vpop.f32.mrf.mxu0
        %v319 = vadd.f32 %v296, %v318
        %320 = vdwg.mxu0
        %v321 = vmax.f32 %v319, 0.0
        %v322 = vld [vmem:[%s3] sm:$0xff]
        %v323 = vld [vmem:[%s3 + $0x8] sm:$0xff]
        %v324 = vld [vmem:[%s3 + $0x10] sm:$0xff]
        %v325 = vld [vmem:[%s3 + $0x18] sm:$0xff]
        %v326 = vld [vmem:[%s3 + $0x20] sm:$0xff]
        %v327 = vld [vmem:[%s3 + $0x28] sm:$0xff]
        %v328 = vld [vmem:[%s3 + $0x30] sm:$0xff]
        %v329 = vld [vmem:[%s3 + $0x38] sm:$0xff]
        %v330 = vld [vmem:[%s4] sm:$0xff]
        %v331 = vld [vmem:[%s4 + $0x8] sm:$0xff]
        %v332 = vld [vmem:[%s4 + $0x10] sm:$0xff]
        %v333 = vld [vmem:[%s4 + $0x18] sm:$0xff]
        %v334 = vld [vmem:[%s4 + $0x20] sm:$0xff]
        %v335 = vld [vmem:[%s4 + $0x28] sm:$0xff]
        %v336 = vld [vmem:[%s4 + $0x30] sm:$0xff]
        %v337 = vld [vmem:[%s4 + $0x38] sm:$0xff]
        %vm338 = vcmask 31744
        %v340 = vsel %vm338, %v322, 0
        %v343 = vsel %vm338, %v323, 0
        %v346 = vsel %vm338, %v324, 0
        %v349 = vsel %vm338, %v325, 0
        %v352 = vsel %vm338, %v326, 0
        %v355 = vsel %vm338, %v327, 0
        %v358 = vsel %vm338, %v328, 0
        %v361 = vsel %vm338, %v329, 0
        %vm363 = vcmask 1043456
        %v365 = vsel %vm363, %v321, 0
        %367 = vmatpush.msra.mxu0 0.0
        %368 = vmatpush.msra.mxu0 0.0
        %369 = vmatpush.msra.mxu0 0.0
        %370 = vmatpush.msra.mxu0 0.0
        %371 = vmatpush.msra.mxu0 0.0
        %372 = vmatpush.msra.mxu0 0.0
        %373 = vmatpush.msra.mxu0 0.0
        %374 = vmatpush.msra.mxu0 0.0
        %375 = vmatpush.msra.mxu0 0.0
        %376 = vmatpush.msra.mxu0 0.0
        %377 = vmatpush.msra.mxu0 0.0
        %378 = vmatpush.msra.mxu0 0.0
        %379 = vmatpush.msra.mxu0 0.0
        %380 = vmatpush.msra.mxu0 0.0
        %381 = vmatpush.msra.mxu0 0.0
        %382 = vmatpush.msra.mxu0 %v365
        %383 = vmatmul.f32.gmra.mxu0 %v340
        %v384 = vpop.f32.mrf.mxu0
        %v385 = vadd.f32 %v330, %v384
        %386 = vmatmul.f32.gmra.mxu0 %v343
        %v387 = vpop.f32.mrf.mxu0
        %v388 = vadd.f32 %v331, %v387
        %389 = vmatmul.f32.gmra.mxu0 %v346
        %v390 = vpop.f32.mrf.mxu0
        %v391 = vadd.f32 %v332, %v390
        %392 = vmatmul.f32.gmra.mxu0 %v349
        %v393 = vpop.f32.mrf.mxu0
        %v394 = vadd.f32 %v333, %v393
        %395 = vmatmul.f32.gmra.mxu0 %v352
        %v396 = vpop.f32.mrf.mxu0
        %v397 = vadd.f32 %v334, %v396
        %398 = vmatmul.f32.gmra.mxu0 %v355
        %v399 = vpop.f32.mrf.mxu0
        %v400 = vadd.f32 %v335, %v399
        %401 = vmatmul.f32.gmra.mxu0 %v358
        %v402 = vpop.f32.mrf.mxu0
        %v403 = vadd.f32 %v336, %v402
        %404 = vmatmul.f32.gmra.mxu0 %v361
        %v405 = vpop.f32.mrf.mxu0
        %v406 = vadd.f32 %v337, %v405
        %407 = vdwg.mxu0
        %v408 = vsub.f32 0.0, %v385
        %v409 = vsub.f32 0.0, %v388
        %v410 = vsub.f32 0.0, %v391
        %v411 = vsub.f32 0.0, %v394
        %v412 = vsub.f32 0.0, %v397
        %v413 = vsub.f32 0.0, %v400
        %v414 = vsub.f32 0.0, %v403
        %v415 = vsub.f32 0.0, %v406
        %v416 = vmul.f32 %v408, 1.442695
        %v417 = vpow.pop %v416
        %v418 = vmul.f32 %v409, 1.442695
        %v419 = vpow.pop %v418
        %v420 = vmul.f32 %v410, 1.442695
        %v421 = vpow.pop %v420
        %v422 = vmul.f32 %v411, 1.442695
        %v423 = vpow.pop %v422
        %v424 = vmul.f32 %v412, 1.442695
        %v425 = vpow.pop %v424
        %v426 = vmul.f32 %v413, 1.442695
        %v427 = vpow.pop %v426
        %v428 = vmul.f32 %v414, 1.442695
        %v429 = vpow.pop %v428
        %v430 = vmul.f32 %v415, 1.442695
        %v431 = vpow.pop %v430
        %v432 = vadd.f32 %v417, 1.0
        %v433 = vadd.f32 %v419, 1.0
        %v434 = vadd.f32 %v421, 1.0
        %v435 = vadd.f32 %v423, 1.0
        %v436 = vadd.f32 %v425, 1.0
        %v437 = vadd.f32 %v427, 1.0
        %v438 = vadd.f32 %v429, 1.0
        %v439 = vadd.f32 %v431, 1.0
        %v440 = vrcp.pop %v432
        %v441 = vmul.f32 %v432, %v440
        %v442 = vsub.f32 1.0, %v441
        %v443 = vmul.f32 %v440, %v442
        %v444 = vadd.f32 %v440, %v443
        %vm445 = vweird.f32 %v432
        %vm446 = vweird.f32 %v440
        %vm447 = vmor %vm445, %vm446
        %v448 = vsel %vm447, %v440, %v444
        %v449 = vand.u32 2147483647, %v432
        %vm450 = vcmp.eq.f32.partialorder %v449, 8.507059e+37
        %v451 = vand.u32 %v432, 2147483648
        %v452 = vor.u32 1.1754944e-38, %v451
        %v453 = vsel %vm450, %v452, %v448
        %v454 = vmul.f32 1.0, %v453
        %v455 = vrcp.pop %v433
        %v456 = vmul.f32 %v433, %v455
        %v457 = vsub.f32 1.0, %v456
        %v458 = vmul.f32 %v455, %v457
        %v459 = vadd.f32 %v455, %v458
        %vm460 = vweird.f32 %v433
        %vm461 = vweird.f32 %v455
        %vm462 = vmor %vm460, %vm461
        %v463 = vsel %vm462, %v455, %v459
        %v464 = vand.u32 2147483647, %v433
        %vm465 = vcmp.eq.f32.partialorder %v464, 8.507059e+37
        %v466 = vand.u32 %v433, 2147483648
        %v467 = vor.u32 1.1754944e-38, %v466
        %v468 = vsel %vm465, %v467, %v463
        %v469 = vmul.f32 1.0, %v468
        %v470 = vrcp.pop %v434
        %v471 = vmul.f32 %v434, %v470
        %v472 = vsub.f32 1.0, %v471
        %v473 = vmul.f32 %v470, %v472
        %v474 = vadd.f32 %v470, %v473
        %vm475 = vweird.f32 %v434
        %vm476 = vweird.f32 %v470
        %vm477 = vmor %vm475, %vm476
        %v478 = vsel %vm477, %v470, %v474
        %v479 = vand.u32 2147483647, %v434
        %vm480 = vcmp.eq.f32.partialorder %v479, 8.507059e+37
        %v481 = vand.u32 %v434, 2147483648
        %v482 = vor.u32 1.1754944e-38, %v481
        %v483 = vsel %vm480, %v482, %v478
        %v484 = vmul.f32 1.0, %v483
        %v485 = vrcp.pop %v435
        %v486 = vmul.f32 %v435, %v485
        %v487 = vsub.f32 1.0, %v486
        %v488 = vmul.f32 %v485, %v487
        %v489 = vadd.f32 %v485, %v488
        %vm490 = vweird.f32 %v435
        %vm491 = vweird.f32 %v485
        %vm492 = vmor %vm490, %vm491
        %v493 = vsel %vm492, %v485, %v489
        %v494 = vand.u32 2147483647, %v435
        %vm495 = vcmp.eq.f32.partialorder %v494, 8.507059e+37
        %v496 = vand.u32 %v435, 2147483648
        %v497 = vor.u32 1.1754944e-38, %v496
        %v498 = vsel %vm495, %v497, %v493
        %v499 = vmul.f32 1.0, %v498
        %v500 = vrcp.pop %v436
        %v501 = vmul.f32 %v436, %v500
        %v502 = vsub.f32 1.0, %v501
        %v503 = vmul.f32 %v500, %v502
        %v504 = vadd.f32 %v500, %v503
        %vm505 = vweird.f32 %v436
        %vm506 = vweird.f32 %v500
        %vm507 = vmor %vm505, %vm506
        %v508 = vsel %vm507, %v500, %v504
        %v509 = vand.u32 2147483647, %v436
        %vm510 = vcmp.eq.f32.partialorder %v509, 8.507059e+37
        %v511 = vand.u32 %v436, 2147483648
        %v512 = vor.u32 1.1754944e-38, %v511
        %v513 = vsel %vm510, %v512, %v508
        %v514 = vmul.f32 1.0, %v513
        %v515 = vrcp.pop %v437
        %v516 = vmul.f32 %v437, %v515
        %v517 = vsub.f32 1.0, %v516
        %v518 = vmul.f32 %v515, %v517
        %v519 = vadd.f32 %v515, %v518
        %vm520 = vweird.f32 %v437
        %vm521 = vweird.f32 %v515
        %vm522 = vmor %vm520, %vm521
        %v523 = vsel %vm522, %v515, %v519
        %v524 = vand.u32 2147483647, %v437
        %vm525 = vcmp.eq.f32.partialorder %v524, 8.507059e+37
        %v526 = vand.u32 %v437, 2147483648
        %v527 = vor.u32 1.1754944e-38, %v526
        %v528 = vsel %vm525, %v527, %v523
        %v529 = vmul.f32 1.0, %v528
        %v530 = vrcp.pop %v438
        %v531 = vmul.f32 %v438, %v530
        %v532 = vsub.f32 1.0, %v531
        %v533 = vmul.f32 %v530, %v532
        %v534 = vadd.f32 %v530, %v533
        %vm535 = vweird.f32 %v438
        %vm536 = vweird.f32 %v530
        %vm537 = vmor %vm535, %vm536
        %v538 = vsel %vm537, %v530, %v534
        %v539 = vand.u32 2147483647, %v438
        %vm540 = vcmp.eq.f32.partialorder %v539, 8.507059e+37
        %v541 = vand.u32 %v438, 2147483648
        %v542 = vor.u32 1.1754944e-38, %v541
        %v543 = vsel %vm540, %v542, %v538
        %v544 = vmul.f32 1.0, %v543
        %v545 = vrcp.pop %v439
        %v546 = vmul.f32 %v439, %v545
        %v547 = vsub.f32 1.0, %v546
        %v548 = vmul.f32 %v545, %v547
        %v549 = vadd.f32 %v545, %v548
        %vm550 = vweird.f32 %v439
        %vm551 = vweird.f32 %v545
        %vm552 = vmor %vm550, %vm551
        %v553 = vsel %vm552, %v545, %v549
        %v554 = vand.u32 2147483647, %v439
        %vm555 = vcmp.eq.f32.partialorder %v554, 8.507059e+37
        %v556 = vand.u32 %v439, 2147483648
        %v557 = vor.u32 1.1754944e-38, %v556
        %v558 = vsel %vm555, %v557, %v553
        %v559 = vmul.f32 1.0, %v558
        %vm560 = vcmask 7168
        %561 = vst.msk [vmem:[%s246] sm:$0xff] %vm560, %v454
        %562 = vst.msk [vmem:[%s246 + $0x8] sm:$0xff] %vm560, %v469
        %563 = vst.msk [vmem:[%s246 + $0x10] sm:$0xff] %vm560, %v484
        %564 = vst.msk [vmem:[%s246 + $0x18] sm:$0xff] %vm560, %v499
        %565 = vst.msk [vmem:[%s246 + $0x20] sm:$0xff] %vm560, %v514
        %566 = vst.msk [vmem:[%s246 + $0x28] sm:$0xff] %vm560, %v529
        %567 = vst.msk [vmem:[%s246 + $0x30] sm:$0xff] %vm560, %v544
        %568 = vst.msk [vmem:[%s246 + $0x38] sm:$0xff] %vm560, %v559
        %p569 = scmp.lt.s32.totalorder %s19, 1
        %s570 = scalar_select %p569, %s19, 1
        %s571 = smul.addr %s570, 8
        %s572 = smul.addr %s571, 8
        %s573 = scalar_lea.vmem %s5, %s572
        // Predicated region
        $region45: #{tpu_custom_call.1} parent=39 // pred_check
          %p574 = pneg %p147
        $region46: #{tpu_custom_call.1} parent=39 // pred_check_branch
          %576 = sbr.rel (%p574) target = $region48
        $region47: #{tpu_custom_call.1} parent=39 // pred_region
          _
        $region48: #{tpu_custom_call.1} parent=39 // pred_fallthru
          _
      $region40: #{tpu_custom_call.1} parent=5 // pred_fallthru
        _
      %p577 = scmp.le.s32.totalorder 2, %s14
      // Predicated region
      $region49: #{tpu_custom_call.1} parent=5 // pred_check
        %p578 = pneg %p577
      $region50: #{tpu_custom_call.1} parent=5 // pred_check_branch
        %580 = sbr.rel (%p578) target = $region52
      $region51: #{tpu_custom_call.1} parent=5 // pred_region
        %s581 = ssub.s32 %s14, 2
        // Predicated region
        $region53: #{tpu_custom_call.1} parent=51 // pred_check
          %p582 = pneg %p153
        $region54: #{tpu_custom_call.1} parent=51 // pred_check_branch
          %584 = sbr.rel (%p582) target = $region56
        $region55: #{tpu_custom_call.1} parent=51 // pred_region
          %p585 = scmp.lt.s32.totalorder %s20, 1
          %s586 = scalar_select %p585, %s20, 1
          %s587 = smul.addr %s586, 8
          %s588 = smul.addr %s587, 8
          %s589 = scalar_lea.vmem %s5, %s588
        $region56: #{tpu_custom_call.1} parent=51 // pred_fallthru
          _
      $region52: #{tpu_custom_call.1} parent=5 // pred_fallthru
        _
    $region6: #{tpu_custom_call.1} parent=1 // loop_footer
      %s18 = sadd.s32 1, %s14
    $region7: #{tpu_custom_call.1} parent=1 // loop_footer_branch
      %13 = sbr.rel target = $region3
    $region8: #{tpu_custom_call.1} parent=1 // loop_exit
      _
    %590 = vsyncpa [#allocation3], 1
    %s591 = scalar_lea.sflag [#allocation3], 1
    %592 = vsyncpa %s591, 1

</llo_original>
